<compile_context>
chip_gen: v7x
topology: tpu7x:2x2x1
jax: 0.10.0
libtpu: 0.0.40
codegen_flags: <defaults>
</compile_context>

<pallas_src>
import functools

import jax
import jax.numpy as jnp
from jax.experimental import pallas as pl
from jax.experimental.pallas import tpu as pltpu


def _ls_ce_kernel(x_ref, tgt_ref, out_ref, *, smoothing, confidence,
                  total_n, tile_n):
    i = pl.program_id(0)

    x = x_ref[...].astype(jnp.float32)        # (TN, C); no-op for f32 inputs
    tgt = tgt_ref[...]                        # (TN, 1) int32
    c = x.shape[-1]

    # Numerically-stable shifted logits. The max cancels in the fused loss
    # because the smoothing weights sum to 1 (confidence + smoothing == 1):
    #   loss_r = logsumexp_c(shifted) - [ (smoothing/C)*sum_c shifted
    #                                     + confidence * shifted[r, tgt_r] ]
    m = jnp.max(x, axis=-1, keepdims=True)                              # (TN,1)
    shifted = x - m                                                     # (TN,C)

    # Target-class contribution via a select-sum (no gather, no weight tensor).
    col = jax.lax.broadcasted_iota(jnp.int32, shifted.shape, 1)         # (TN,C)
    sel = jnp.where(col == tgt, shifted, 0.0)                           # (TN,C)
    sum_sel = jnp.sum(sel, axis=-1, keepdims=True)                      # (TN,1)
    sum_all = jnp.sum(shifted, axis=-1, keepdims=True)                  # (TN,1)

    lse = jnp.log(jnp.sum(jnp.exp(shifted), axis=-1, keepdims=True))    # (TN,1)

    loss = lse - (jnp.float32(smoothing / c) * sum_all
                  + jnp.float32(confidence) * sum_sel)                  # (TN,1)

    # Mask rows past the true batch size (trailing partial block reads garbage
    # that may be NaN/Inf — jnp.where still returns exactly 0.0 for them).
    row = i * tile_n + jax.lax.broadcasted_iota(jnp.int32, (tile_n, 1), 0)
    masked = jnp.where(row < total_n, loss, 0.0)                        # (TN,1)

    # One partial sum per grid step, written into element [0, 0] of an aligned
    # (8, 128) block -> a single unmasked store, no per-row HBM writeback.
    tile_sum = jnp.sum(masked, axis=0, keepdims=True)                   # (1,1)
    r8 = jax.lax.broadcasted_iota(jnp.int32, (8, 128), 0)
    c8 = jax.lax.broadcasted_iota(jnp.int32, (8, 128), 1)
    out_ref[...] = jnp.where((r8 == 0) & (c8 == 0), tile_sum, 0.0)


def _vmem_limits():
    """Generation-aware (scoped-VMEM limit, tile-choice budget) in bytes."""
    try:
        cap = int(pltpu.get_tpu_info().vmem_capacity_bytes)
    except Exception:                      # no TPU info available -> be safe
        cap = 64 * 1024 * 1024             # v7x-sized assumption
    # Leave compiler-scratch headroom: 96 MiB limit on 128 MiB parts
    # (v5e/v6e), 48 MiB on 64 MiB parts (v7x).
    limit = min((cap * 3) // 4, cap - (8 << 20))
    # Budget covers the terms modelled in _choose_tile_n; the remainder of the
    # limit absorbs layout padding / compiler temporaries we do not model.
    budget = (limit * 3) // 5
    return int(limit), int(budget)


def _choose_tile_n(n, c, x_itemsize, vmem_budget_bytes):
    """Largest 8-aligned batch tile whose modelled working set fits the budget.

    Per-row VMEM model (bytes), double-buffering and lane padding included:
      * logits input block, double-buffered
      * up to 3 live (TN, C) 32-bit temporaries (shifted, class iota, select)
      * f32 upcast copy when the input is sub-32-bit (bf16)
      * (TN, 1) int32 target block, double-buffered, lane-padded 128x
      * ~8 (TN, 1) f32 row-vector intermediates, each lane-padded 128x
    Sizing by payload (not a fixed row cap) keeps each grid step streaming
    multi-MiB logit tiles so the ~0.35 us/step pipeline overhead is hidden.
    """
    upcast = c * 4 if x_itemsize < 4 else 0
    per_row = (2 * c * x_itemsize      # input block x2 buffers
               + 3 * c * 4             # peak (TN, C) temporaries
               + upcast                # f32 copy of a bf16 tile
               + 2 * 128 * 4           # lane-padded target block x2 buffers
               + 8 * 128 * 4)          # lane-padded (TN, 1) intermediates
    tile = vmem_budget_bytes // per_row
    tile = max(8, min(32768, (tile // 8) * 8))
    n_up8 = ((n + 7) // 8) * 8
    return int(min(tile, n_up8))


def label_smoothing_cross_entropy(x, target, *, smoothing=0.1, tile_n=None):
    """Pallas equivalent of LabelSmoothingCrossEntropy(smoothing)(x, target)."""
    n, c = x.shape
    confidence = 1.0 - smoothing

    limit_bytes, budget_bytes = _vmem_limits()
    if tile_n is None:
        tile_n = _choose_tile_n(n, c, jnp.dtype(x.dtype).itemsize, budget_bytes)
    n_up8 = ((n + 7) // 8) * 8
    tile_n = max(8, min((int(tile_n) // 8) * 8, n_up8))
    num_tiles = int(pl.cdiv(n, tile_n))

    # Tiny reshape only (no pad / copy of the large logits tensor). The
    # trailing partial block of both x and the targets is masked in-kernel.
    tgt2d = target.astype(jnp.int32).reshape(n, 1)

    kernel = functools.partial(
        _ls_ce_kernel, smoothing=float(smoothing), confidence=float(confidence),
        total_n=n, tile_n=tile_n)

    # One (8, 128) partial-sum block per grid step; only [0, 0] is non-zero.
    partials = pl.pallas_call(
        kernel,
        out_shape=jax.ShapeDtypeStruct((num_tiles * 8, 128), jnp.float32),
        grid=(num_tiles,),
        in_specs=[
            pl.BlockSpec((tile_n, c), lambda i: (i, 0)),
            pl.BlockSpec((tile_n, 1), lambda i: (i, 0)),
        ],
        out_specs=pl.BlockSpec((8, 128), lambda i: (i, 0)),
        compiler_params=pltpu.CompilerParams(
            # Independent tiles -> shard the batch axis across TensorCores.
            # (If a v7x profile shows a single active TC, switch this axis to
            #  pltpu.CORE_PARALLEL.)
            dimension_semantics=("parallel",),
            vmem_limit_bytes=limit_bytes),
    )(x, tgt2d)

    return jnp.sum(partials) / jnp.float32(n)


def _reference(x, target, smoothing=0.1):
    confidence = 1.0 - smoothing
    logprobs = jax.nn.log_softmax(x.astype(jnp.float32), axis=-1)
    nll = -jnp.take_along_axis(
        logprobs, target[:, None].astype(jnp.int32), axis=-1)[:, 0]
    smooth = -jnp.mean(logprobs, axis=-1)
    return jnp.mean(confidence * nll + smoothing * smooth)


if __name__ == "__main__":
    key = jax.random.PRNGKey(0)
    kx, kt = jax.random.split(key)

    # Small demo shapes: batch=16 rows, 128 classes.
    N, C = 16, 128
    x = jax.random.normal(kx, (N, C), dtype=jnp.float32)
    target = jax.random.randint(kt, (N,), 0, C, dtype=jnp.int32)
    loss = jax.block_until_ready(
        label_smoothing_cross_entropy(x, target, smoothing=0.1))
    ref = _reference(x, target, smoothing=0.1)
    assert jnp.allclose(loss, ref, atol=1e-4, rtol=1e-5), (loss, ref)

    # Ragged batch + non-128 class count exercises the unpadded partial-block
    # path (13 rows, tile rounded to 16 -> 3 garbage rows masked in-kernel).
    kx2, kt2 = jax.random.split(kt)
    N2, C2 = 13, 100
    x2 = jax.random.normal(kx2, (N2, C2), dtype=jnp.float32)
    t2 = jax.random.randint(kt2, (N2,), 0, C2, dtype=jnp.int32)
    loss2 = jax.block_until_ready(
        label_smoothing_cross_entropy(x2, t2, smoothing=0.1))
    ref2 = _reference(x2, t2, smoothing=0.1)
    assert jnp.allclose(loss2, ref2, atol=1e-4, rtol=1e-5), (loss2, ref2)

    # Forced small tile -> multi-step grid with a partial trailing block,
    # exercising the per-tile partial-sum output path (23 = 8 + 8 + 7 rows).
    kx3, kt3 = jax.random.split(kt2)
    N3, C3 = 23, 128
    x3 = jax.random.normal(kx3, (N3, C3), dtype=jnp.float32)
    t3 = jax.random.randint(kt3, (N3,), 0, C3, dtype=jnp.int32)
    loss3 = jax.block_until_ready(
        label_smoothing_cross_entropy(x3, t3, smoothing=0.1, tile_n=8))
    ref3 = _reference(x3, t3, smoothing=0.1)
    assert jnp.allclose(loss3, ref3, atol=1e-4, rtol=1e-5), (loss3, ref3)

    print("KERNEL_OK")
</pallas_src>

<mosaic_0001>
module attributes {stable_mosaic.version = 11 : i64} {
  func.func @_ls_ce_kernel(%arg0: i32, %arg1: memref<16x128xf32, #tpu.memory_space<vmem>>, %arg2: memref<16x1xi32, #tpu.memory_space<vmem>>, %arg3: memref<8x128xf32, #tpu.memory_space<vmem>>) attributes {dimension_semantics = [#tpu.dimension_semantics<parallel>], iteration_bounds = array<i64: 1>, scalar_prefetch = 0 : i64, scratch_operands = 0 : i64, tpu.core_type = #tpu.core_type<tc>, window_params = [{transform_indices = @transform_0, window_bounds = array<i64: 16, 128>}, {transform_indices = @transform_1, window_bounds = array<i64: 16, 1>}, {transform_indices = @transform_2, window_bounds = array<i64: 8, 128>}]} {
    %c0 = arith.constant 0 : index
    %c0_0 = arith.constant 0 : index
    %0 = vector.load %arg1[%c0, %c0_0] : memref<16x128xf32, #tpu.memory_space<vmem>>, vector<16x128xf32>
    %c0_1 = arith.constant 0 : index
    %c0_2 = arith.constant 0 : index
    %1 = vector.load %arg2[%c0_1, %c0_2] : memref<16x1xi32, #tpu.memory_space<vmem>>, vector<16x1xi32>
    %cst = arith.constant dense<0xFF800000> : vector<16xf32>
    %2 = vector.multi_reduction <maximumf>, %0, %cst [1] : vector<16x128xf32> to vector<16xf32>
    %3 = vector.shape_cast %2 : vector<16xf32> to vector<16x1xf32>
    %4 = vector.broadcast %3 : vector<16x1xf32> to vector<16x128xf32>
    %5 = arith.subf %0, %4 : vector<16x128xf32>
    %6 = tpu.iota {dimensions = array<i32: 1>} : vector<16x128xi32>
    %7 = vector.broadcast %1 : vector<16x1xi32> to vector<16x128xi32>
    %8 = arith.cmpi eq, %6, %7 : vector<16x128xi32>
    %cst_3 = arith.constant 0.000000e+00 : f32
    %9 = vector.broadcast %cst_3 : f32 to vector<16x128xf32>
    %10 = arith.select %8, %5, %9 : vector<16x128xi1>, vector<16x128xf32>
    %cst_4 = arith.constant dense<0.000000e+00> : vector<16xf32>
    %11 = vector.multi_reduction <add>, %10, %cst_4 [1] : vector<16x128xf32> to vector<16xf32>
    %12 = vector.shape_cast %11 : vector<16xf32> to vector<16x1xf32>
    %cst_5 = arith.constant dense<0.000000e+00> : vector<16xf32>
    %13 = vector.multi_reduction <add>, %5, %cst_5 [1] : vector<16x128xf32> to vector<16xf32>
    %14 = vector.shape_cast %13 : vector<16xf32> to vector<16x1xf32>
    %15 = math.exp %5 : vector<16x128xf32>
    %cst_6 = arith.constant dense<0.000000e+00> : vector<16xf32>
    %16 = vector.multi_reduction <add>, %15, %cst_6 [1] : vector<16x128xf32> to vector<16xf32>
    %17 = vector.shape_cast %16 : vector<16xf32> to vector<16x1xf32>
    %18 = math.log %17 : vector<16x1xf32>
    %cst_7 = arith.constant 7.812500e-04 : f32
    %19 = vector.broadcast %cst_7 : f32 to vector<16x1xf32>
    %20 = arith.mulf %19, %14 : vector<16x1xf32>
    %cst_8 = arith.constant 0.899999976 : f32
    %21 = vector.broadcast %cst_8 : f32 to vector<16x1xf32>
    %22 = arith.mulf %21, %12 : vector<16x1xf32>
    %23 = arith.addf %20, %22 : vector<16x1xf32>
    %24 = arith.subf %18, %23 : vector<16x1xf32>
    %c16_i32 = arith.constant 16 : i32
    %25 = arith.muli %arg0, %c16_i32 : i32
    %26 = tpu.iota {dimensions = array<i32: 0>} : vector<16x1xi32>
    %27 = vector.broadcast %25 : i32 to vector<16x1xi32>
    %28 = arith.addi %27, %26 : vector<16x1xi32>
    %c16_i32_9 = arith.constant 16 : i32
    %29 = vector.broadcast %c16_i32_9 : i32 to vector<16x1xi32>
    %30 = arith.cmpi slt, %28, %29 : vector<16x1xi32>
    %cst_10 = arith.constant 0.000000e+00 : f32
    %31 = vector.broadcast %cst_10 : f32 to vector<16x1xf32>
    %32 = arith.select %30, %24, %31 : vector<16x1xi1>, vector<16x1xf32>
    %cst_11 = arith.constant dense<0.000000e+00> : vector<1xf32>
    %33 = vector.multi_reduction <add>, %32, %cst_11 [0] : vector<16x1xf32> to vector<1xf32>
    %34 = vector.shape_cast %33 : vector<1xf32> to vector<1x1xf32>
    %35 = tpu.iota {dimensions = array<i32: 0>} : vector<8x128xi32>
    %36 = tpu.iota {dimensions = array<i32: 1>} : vector<8x128xi32>
    %c0_i32 = arith.constant 0 : i32
    %37 = vector.broadcast %c0_i32 : i32 to vector<8x128xi32>
    %38 = arith.cmpi eq, %35, %37 : vector<8x128xi32>
    %c0_i32_12 = arith.constant 0 : i32
    %39 = vector.broadcast %c0_i32_12 : i32 to vector<8x128xi32>
    %40 = arith.cmpi eq, %36, %39 : vector<8x128xi32>
    %41 = arith.andi %38, %40 : vector<8x128xi1>
    %cst_13 = arith.constant 0.000000e+00 : f32
    %42 = vector.shape_cast %34 : vector<1x1xf32> to vector<1x1xf32>
    %43 = vector.broadcast %42 : vector<1x1xf32> to vector<8x128xf32>
    %44 = vector.broadcast %cst_13 : f32 to vector<8x128xf32>
    %45 = arith.select %41, %43, %44 : vector<8x128xi1>, vector<8x128xf32>
    %c0_14 = arith.constant 0 : index
    %c0_15 = arith.constant 0 : index
    %46 = vector.load %arg3[%c0_14, %c0_15] : memref<8x128xf32, #tpu.memory_space<vmem>>, vector<8x128xf32>
    tpu.vector_store %arg3[%c0_14, %c0_15], %45 {strides = array<i32>} : memref<8x128xf32, #tpu.memory_space<vmem>>, vector<8x128xf32>,
    return
  }
  func.func @transform_0(%arg0: i32) -> (i32, i32) {
    %c0_i32 = arith.constant 0 : i32
    %c0_i32_0 = arith.constant 0 : i32
    return %arg0, %c0_i32 : i32, i32
  }
  func.func @transform_1(%arg0: i32) -> (i32, i32) {
    %c0_i32 = arith.constant 0 : i32
    %c0_i32_0 = arith.constant 0 : i32
    return %arg0, %c0_i32 : i32, i32
  }
  func.func @transform_2(%arg0: i32) -> (i32, i32) {
    %c0_i32 = arith.constant 0 : i32
    %c0_i32_0 = arith.constant 0 : i32
    return %arg0, %c0_i32 : i32, i32
  }
}

</mosaic_0001>

<llo_original>
// kernel: tpu_custom_call.1
$region0: #{tpu_custom_call.1}
  #allocation0 [shape = 'u32[]', space=smem, size = 0x4, offset = 0x4, fixed_abs, tag = 'smem constant byte address 0x4 - core index']
  #allocation1 [shape = 'u32[144,128]{1,0:T(1,128)}', space=vmem, size = 0x12000, scoped, tag = 'internal scratch']
  %s0 = inlined_call_operand.vmem [shape: f32[16,128], index: 0, kind: input, shape index: {}]
  %s1 = inlined_call_operand.vmem [shape: s32[16,1], index: 1, kind: input, shape index: {}]
  %s2 = inlined_call_operand.hbm [shape: f32[8,128], index: 2, kind: output, shape index: {}]
  %s3 = sld [smem:[#allocation0]]
  $region18: #{tpu_custom_call.1} parent=0
    _
  %s5 = ssub.s32 1, %s3
  %s6 = scalar_select 0, %s5, %s3
  $region1: #{tpu_custom_call.1} parent=0
    #allocation2 [shape = 'u8[4096]{0}', space=vmem, size = 0x1000, scoped, tag = 'output window, operand 0, single buffered']
    #allocation3 [shape = 's32[1]{0}', space=sflag, size = 0x4, scoped, tag = 'scoped memory for tpu_custom_call.1']
    %7 = vsyncpa [#allocation3], 0
    // Predicated region
    $region2: #{tpu_custom_call.1} parent=1 // pred_check
      _
    $region3: #{tpu_custom_call.1} parent=1 // pred_check_branch
      %9 = sbr.rel (0) target = $region5
    $region4: #{tpu_custom_call.1} parent=1 // pred_region
      _
    $region5: #{tpu_custom_call.1} parent=1 // pred_fallthru
      _
    // Predicated region
    $region6: #{tpu_custom_call.1} parent=1 // pred_check
      _
    $region7: #{tpu_custom_call.1} parent=1 // pred_check_branch
      %11 = sbr.rel (0) target = $region9
    $region8: #{tpu_custom_call.1} parent=1 // pred_region
      _
    $region9: #{tpu_custom_call.1} parent=1 // pred_fallthru
      _
    %v12 = vld [vmem:[%s0] sm:$0xff]
    %v13 = vld [vmem:[%s0 + $0x8] sm:$0xff]
    %v14 = vld [vmem:[%s1] sm:$0xff]
    %v15 = vld [vmem:[%s1 + $0x8] sm:$0xff]
    %16 = vmax.xlane.f32.xlu0 %v12
    %v17 = vpop.xlane.xlu0 %16
    %18 = vmax.xlane.f32.xlu0 %v13
    %v19 = vpop.xlane.xlu0 %18
    %v20 = vsub.f32 %v12, %v17
    %v21 = vsub.f32 %v13, %v19
    %v22 = vlaneseq
    %v23 = vand.u32 %v22, 127
    %24 = vset.pattern.permute.xlu0 0
    %25 = vperm.xlu0 %24, %v14
    %v26 = vpop.permute.xlu0 %25
    %27 = vset.pattern.permute.xlu0 0
    %28 = vperm.xlu0 %27, %v15
    %v29 = vpop.permute.xlu0 %28
    %vm30 = vcmp.eq.s32.totalorder %v23, %v26
    %vm31 = vcmp.eq.s32.totalorder %v23, %v29
    %v32 = vsel %vm30, %v20, 0.0
    %v33 = vsel %vm31, %v21, 0.0
    %34 = vadd.xlane.f32.xlu0 %v32
    %v35 = vpop.xlane.xlu0 %34
    %36 = vadd.xlane.f32.xlu0 %v33
    %v37 = vpop.xlane.xlu0 %36
    %38 = vadd.xlane.f32.xlu0 %v20
    %v39 = vpop.xlane.xlu0 %38
    %40 = vadd.xlane.f32.xlu0 %v21
    %v41 = vpop.xlane.xlu0 %40
    %v42 = vmul.f32 %v20, 1.442695
    %v43 = vpow.pop %v42
    %v44 = vmul.f32 %v21, 1.442695
    %v45 = vpow.pop %v44
    %46 = vadd.xlane.f32.xlu0 %v43
    %v47 = vpop.xlane.xlu0 %46
    %48 = vadd.xlane.f32.xlu0 %v45
    %v49 = vpop.xlane.xlu0 %48
    %v50 = vlog2.pop %v47
    %v51 = vmul.f32 %v50, 0.6931472
    %v52 = vlog2.pop %v49
    %v53 = vmul.f32 %v52, 0.6931472
    %v54 = vmul.f32 %v39, 0.00078125
    %v55 = vmul.f32 %v41, 0.00078125
    %v56 = vmul.f32 %v35, 0.9
    %v57 = vmul.f32 %v37, 0.9
    %v58 = vadd.f32 %v54, %v56
    %v59 = vadd.f32 %v55, %v57
    %v60 = vsub.f32 %v51, %v58
    %v61 = vsub.f32 %v53, %v59
    %s62 = smul.u32 0, 16
    %v63 = vlaneseq
    %v64 = vshrl.u32 %v63, 7
    %v65 = vadd.s32 %v64, 8
    %v66 = vstv %s62
    %v67 = vadd.s32 %v66, %v64
    %v68 = vadd.s32 %v66, %v65
    %vm69 = vcmp.lt.s32.totalorder %v67, 16
    %vm70 = vcmp.lt.s32.totalorder %v68, 16
    %v71 = vsel %vm69, %v60, 0.0
    %v72 = vsel %vm70, %v61, 0.0
    %v73 = vadd.f32 %v71, %v72
    %v74 = vrot.slane %v73, 4
    %v75 = vadd.f32 %v73, %v74
    %v76 = vrot.slane %v75, 2
    %v77 = vadd.f32 %v75, %v76
    %v78 = vrot.slane %v77, 1
    %v79 = vadd.f32 %v77, %v78
    %vm80 = vcmp.eq.s32.totalorder %v64, 0
    %vm81 = vcmp.eq.s32.totalorder %v23, 0
    %vm82 = vmand %vm80, %vm81
    %v83 = vsel %vm82, %v79, 0.0
    %84 = vst [vmem:[#allocation2] sm:$0xff] %v83
    // Predicated region
    $region10: #{tpu_custom_call.1} parent=1 // pred_check
      _
    $region11: #{tpu_custom_call.1} parent=1 // pred_check_branch
      %86 = sbr.rel (0) target = $region13
    $region12: #{tpu_custom_call.1} parent=1 // pred_region
      %s88 = ssub.s32 128, 128
      %89 = vsyncadd [#allocation3], %s88
      %s91 = sshll.u32 [#allocation2], 4
      %s92 = int_to_ptr.vmem [resolvable:$true] %s91
      %94 = dma.vmem_to_hbm [thread:$0]  %s92, 128, %s2, [#allocation3]
    $region13: #{tpu_custom_call.1} parent=1 // pred_fallthru
      _
    // Predicated region
    $region14: #{tpu_custom_call.1} parent=1 // pred_check
      _
    $region15: #{tpu_custom_call.1} parent=1 // pred_check_branch
      %96 = sbr.rel (0) target = $region17
    $region16: #{tpu_custom_call.1} parent=1 // pred_region
      %97 = dma.done [#allocation3], 128
    $region17: #{tpu_custom_call.1} parent=1 // pred_fallthru
      _
    %98 = vsyncpa [#allocation3], 1

</llo_original>
